<compile_context>
chip_gen: v7x
topology: tpu7x:2x2x1
jax: 0.10.0
libtpu: 0.0.40
codegen_flags: <defaults>
</compile_context>

<pallas_src>
import jax
import jax.numpy as jnp
from jax import lax
from jax.experimental import pallas as pl
from jax.experimental.pallas import tpu as pltpu

N_EMBD = 120  # matches the PyTorch module's n_embd
_LANE = 128


def _head_kernel(x_ref, wqkv_ref, o_ref):
    # x_ref:    (BB, T, Cp)  -- BB batch elements, C zero-padded to Cp
    # wqkv_ref: (Cp, 3H)     -- fused [Wq | Wk | Wv] projection weights
    # o_ref:    (BB, T, H)
    BB, T, Cp = x_ref.shape
    H = o_ref.shape[-1]

    # ---- fused QKV projection: one wide matmul over all BB*T rows ----------
    x2d = x_ref[...].reshape(BB * T, Cp)
    qkv = jnp.dot(
        x2d.astype(jnp.bfloat16),
        wqkv_ref[...].astype(jnp.bfloat16),
        preferred_element_type=jnp.float32,
    )  # (BB*T, 3H), f32 accumulation
    qkv = qkv.reshape(BB, T, 3 * H)

    q = qkv[:, :, :H]
    k = qkv[:, :, H:2 * H]
    v = qkv[:, :, 2 * H:]

    # Scale q (T*H elems) instead of the (T, T) score matrix.
    scale = 1.0 / jnp.sqrt(jnp.float32(H))
    q_b = (q * scale).astype(jnp.bfloat16)
    k_b = k.astype(jnp.bfloat16)
    v_b = v.astype(jnp.bfloat16)

    # ---- causal scaled-dot-product attention --------------------------------
    # Contract last dims directly (no explicit k transpose).
    scores = jnp.einsum(
        "bqd,bkd->bqk", q_b, k_b, preferred_element_type=jnp.float32
    )  # (BB, T, T), f32

    row = lax.broadcasted_iota(jnp.int32, (T, T), 0)
    col = lax.broadcasted_iota(jnp.int32, (T, T), 1)
    causal = (row >= col)[None, :, :]
    scores = jnp.where(causal, scores, -jnp.inf)

    # Numerically stable softmax in f32; the diagonal is always unmasked so
    # no all--inf rows.  p stays UNNORMALIZED through the PV matmul; the
    # 1/denom scale is applied to the (BB,T,H) output (T/H fewer multiplies
    # than scaling the (BB,T,T) attention matrix).
    m = jnp.max(scores, axis=-1, keepdims=True)
    p = jnp.exp(scores - m)                             # values in [0, 1]
    denom = jnp.sum(p, axis=-1, keepdims=True)          # (BB, T, 1)
    inv_denom = pl.reciprocal(denom, approx=True)       # EUP slot, ~free

    out = jnp.einsum(
        "bqk,bkd->bqd",
        p.astype(jnp.bfloat16),
        v_b,
        preferred_element_type=jnp.float32,
    )  # (BB, T, H), f32
    o_ref[...] = (out * inv_denom).astype(o_ref.dtype)


def _pick_bb(B, T, target_rows=256):
    """Largest divisor of B such that BB*T ~ fills the MXU row dimension."""
    bb = max(1, min(B, max(1, target_rows // max(T, 1))))
    while B % bb != 0:
        bb -= 1
    return bb


def head_forward(x, wq, wk, wv):
    """x: (B, T, C) float32; wq/wk/wv: (C, H) float32. Returns (B, T, H)."""
    B, T, C = x.shape
    H = wq.shape[1]
    assert wq.shape == (C, H) and wk.shape == (C, H) and wv.shape == (C, H)

    # Fuse the three projection weights into one (C, 3H) matrix.
    wqkv = jnp.concatenate([wq, wk, wv], axis=1)

    # Zero-pad the contraction dim C up to a lane-aligned multiple of 128.
    # Exact: padded x columns multiply padded (zero) weight rows.
    Cp = ((C + _LANE - 1) // _LANE) * _LANE
    if Cp != C:
        x = jnp.pad(x, ((0, 0), (0, 0), (0, Cp - C)))
        wqkv = jnp.pad(wqkv, ((0, Cp - C), (0, 0)))

    BB = _pick_bb(B, T)
    grid = (B // BB,)

    cost = pl.CostEstimate(
        flops=2 * B * T * C * 3 * H + 4 * B * T * T * H,
        transcendentals=B * T * T,
        bytes_accessed=4 * (B * T * Cp + Cp * 3 * H + B * T * H),
    )

    return pl.pallas_call(
        _head_kernel,
        out_shape=jax.ShapeDtypeStruct((B, T, H), x.dtype),
        grid_spec=pltpu.PrefetchScalarGridSpec(
            num_scalar_prefetch=0,
            grid=grid,
            in_specs=[
                pl.BlockSpec((BB, T, Cp), lambda b: (b, 0, 0)),
                pl.BlockSpec((Cp, 3 * H), lambda b: (0, 0)),
            ],
            out_specs=pl.BlockSpec((BB, T, H), lambda b: (b, 0, 0)),
        ),
        compiler_params=pltpu.CompilerParams(
            dimension_semantics=("parallel",),
            vmem_limit_bytes=64 * 1024 * 1024,
        ),
        cost_estimate=cost,
    )(x, wqkv)


def head_forward_ref(x, wq, wk, wv):
    """Plain-JAX f32 reference (mirrors F.scaled_dot_product_attention, is_causal)."""
    q = x @ wq
    k = x @ wk
    v = x @ wv
    H = q.shape[-1]
    scores = jnp.einsum("btd,bsd->bts", q, k) / jnp.sqrt(jnp.float32(H))
    T = q.shape[1]
    mask = jnp.tril(jnp.ones((T, T), dtype=bool))
    scores = jnp.where(mask[None], scores, -jnp.inf)
    attn = jax.nn.softmax(scores, axis=-1)
    return jnp.einsum("bts,bsd->btd", attn, v)


if __name__ == "__main__":
    B, T, C = 2, 8, N_EMBD
    head_size = 32

    key = jax.random.PRNGKey(0)
    kx, kq, kk, kv = jax.random.split(key, 4)

    x = jax.random.normal(kx, (B, T, C), dtype=jnp.float32)
    # Same shape semantics as nn.Linear(C, H).weight.T, PyTorch-style init bound.
    bound = 1.0 / jnp.sqrt(jnp.float32(C))
    wq = jax.random.uniform(kq, (C, head_size), jnp.float32, -bound, bound)
    wk = jax.random.uniform(kk, (C, head_size), jnp.float32, -bound, bound)
    wv = jax.random.uniform(kv, (C, head_size), jnp.float32, -bound, bound)

    out = head_forward(x, wq, wk, wv)
    out = jax.block_until_ready(out)

    ref = head_forward_ref(x, wq, wk, wv)
    assert out.shape == (B, T, head_size)
    # bf16 MXU inputs + approx reciprocal -> relaxed tolerance vs f32 reference.
    assert jnp.allclose(out, ref, atol=2e-2, rtol=2e-2), "mismatch vs reference"

    print("KERNEL_OK")
</pallas_src>

<mosaic_0001>
module attributes {stable_mosaic.version = 11 : i64} {
  func.func @_head_kernel(%arg0: i32, %arg1: memref<2x8x128xf32, #tpu.memory_space<vmem>>, %arg2: memref<128x96xf32, #tpu.memory_space<vmem>>, %arg3: memref<2x8x32xf32, #tpu.memory_space<vmem>>) attributes {dimension_semantics = [#tpu.dimension_semantics<parallel>], iteration_bounds = array<i64: 1>, scalar_prefetch = 0 : i64, scratch_operands = 0 : i64, tpu.core_type = #tpu.core_type<tc>, window_params = [{transform_indices = @transform_0, window_bounds = array<i64: 2, 8, 128>}, {pipeline_mode = #tpu.pipeline_mode<synchronous>, transform_indices = @transform_1, window_bounds = array<i64: 128, 96>}, {transform_indices = @transform_2, window_bounds = array<i64: 2, 8, 32>}]} {
    %c0 = arith.constant 0 : index
    %c0_0 = arith.constant 0 : index
    %c0_1 = arith.constant 0 : index
    %0 = vector.load %arg1[%c0, %c0_0, %c0_1] : memref<2x8x128xf32, #tpu.memory_space<vmem>>, vector<2x8x128xf32>
    %1 = vector.shape_cast %0 : vector<2x8x128xf32> to vector<16x128xf32>
    %2 = arith.truncf %1 : vector<16x128xf32> to vector<16x128xbf16>
    %c0_2 = arith.constant 0 : index
    %c0_3 = arith.constant 0 : index
    %3 = vector.load %arg2[%c0_2, %c0_3] : memref<128x96xf32, #tpu.memory_space<vmem>>, vector<128x96xf32>
    %4 = arith.truncf %3 : vector<128x96xf32> to vector<128x96xbf16>
    %cst = arith.constant dense<0.000000e+00> : vector<16x96xf32>
    %5 = tpu.matmul %2, %4, %cst {dimension_numbers = #tpu.dot_dimension_numbers<[1], [0], [0], [1], [0, 0, 1, 1], [], []>} : vector<16x128xbf16>, vector<128x96xbf16>, vector<16x96xf32> -> vector<16x96xf32>
    %6 = vector.shape_cast %5 : vector<16x96xf32> to vector<2x8x96xf32>
    %7 = vector.extract_strided_slice %6 {offsets = [0, 0, 0], sizes = [2, 8, 32], strides = [1, 1, 1]} : vector<2x8x96xf32> to vector<2x8x32xf32>
    %8 = vector.extract_strided_slice %6 {offsets = [0, 0, 32], sizes = [2, 8, 32], strides = [1, 1, 1]} : vector<2x8x96xf32> to vector<2x8x32xf32>
    %9 = vector.extract_strided_slice %6 {offsets = [0, 0, 64], sizes = [2, 8, 32], strides = [1, 1, 1]} : vector<2x8x96xf32> to vector<2x8x32xf32>
    %cst_4 = arith.constant 3.200000e+01 : f32
    %10 = math.sqrt %cst_4 : f32
    %cst_5 = arith.constant 1.000000e+00 : f32
    %11 = arith.divf %cst_5, %10 : f32
    %12 = vector.broadcast %11 : f32 to vector<2x8x32xf32>
    %13 = arith.mulf %7, %12 : vector<2x8x32xf32>
    %14 = arith.truncf %13 : vector<2x8x32xf32> to vector<2x8x32xbf16>
    %15 = arith.truncf %8 : vector<2x8x32xf32> to vector<2x8x32xbf16>
    %16 = arith.truncf %9 : vector<2x8x32xf32> to vector<2x8x32xbf16>
    "tpu.trace_start"() <{level = 10 : i32, message = "bqd,bkd->bqk"}> : () -> ()
    %cst_6 = arith.constant dense<0.000000e+00> : vector<2x8x8xf32>
    %17 = tpu.matmul %14, %15, %cst_6 {dimension_numbers = #tpu.dot_dimension_numbers<[2], [2], [1], [1], [0, 0, 0, 1, 1, 1], [0], [0]>} : vector<2x8x32xbf16>, vector<2x8x32xbf16>, vector<2x8x8xf32> -> vector<2x8x8xf32>
    "tpu.trace_stop"() : () -> ()
    %18 = tpu.iota {dimensions = array<i32: 0>} : vector<8x8xi32>
    %19 = tpu.iota {dimensions = array<i32: 1>} : vector<8x8xi32>
    %20 = arith.cmpi sge, %18, %19 : vector<8x8xi32>
    %21 = vector.shape_cast %20 : vector<8x8xi1> to vector<1x8x8xi1>
    %cst_7 = arith.constant 0xFF800000 : f32
    %22 = vector.shape_cast %21 : vector<1x8x8xi1> to vector<1x8x8xi1>
    %23 = vector.broadcast %22 : vector<1x8x8xi1> to vector<2x8x8xi1>
    %24 = vector.broadcast %cst_7 : f32 to vector<2x8x8xf32>
    %25 = arith.select %23, %17, %24 : vector<2x8x8xi1>, vector<2x8x8xf32>
    %cst_8 = arith.constant dense<0xFF800000> : vector<2x8xf32>
    %26 = vector.multi_reduction <maximumf>, %25, %cst_8 [2] : vector<2x8x8xf32> to vector<2x8xf32>
    %27 = vector.shape_cast %26 : vector<2x8xf32> to vector<2x8x1xf32>
    %28 = vector.broadcast %27 : vector<2x8x1xf32> to vector<2x8x8xf32>
    %29 = arith.subf %25, %28 : vector<2x8x8xf32>
    %30 = math.exp %29 : vector<2x8x8xf32>
    %cst_9 = arith.constant dense<0.000000e+00> : vector<2x8xf32>
    %31 = vector.multi_reduction <add>, %30, %cst_9 [2] : vector<2x8x8xf32> to vector<2x8xf32>
    %32 = vector.shape_cast %31 : vector<2x8xf32> to vector<2x8x1xf32>
    %33 = tpu.reciprocal %32 {approx = true} : vector<2x8x1xf32> -> vector<2x8x1xf32>
    %34 = arith.truncf %30 : vector<2x8x8xf32> to vector<2x8x8xbf16>
    "tpu.trace_start"() <{level = 10 : i32, message = "bqk,bkd->bqd"}> : () -> ()
    %cst_10 = arith.constant dense<0.000000e+00> : vector<2x8x32xf32>
    %35 = tpu.matmul %34, %16, %cst_10 {dimension_numbers = #tpu.dot_dimension_numbers<[2], [1], [1], [2], [0, 0, 0, 1, 1, 2], [0], [0]>} : vector<2x8x8xbf16>, vector<2x8x32xbf16>, vector<2x8x32xf32> -> vector<2x8x32xf32>
    "tpu.trace_stop"() : () -> ()
    %36 = vector.broadcast %33 : vector<2x8x1xf32> to vector<2x8x32xf32>
    %37 = arith.mulf %35, %36 : vector<2x8x32xf32>
    %c0_11 = arith.constant 0 : index
    %c0_12 = arith.constant 0 : index
    %c0_13 = arith.constant 0 : index
    %38 = vector.load %arg3[%c0_11, %c0_12, %c0_13] : memref<2x8x32xf32, #tpu.memory_space<vmem>>, vector<2x8x32xf32>
    tpu.vector_store %arg3[%c0_11, %c0_12, %c0_13], %37 {strides = array<i32>} : memref<2x8x32xf32, #tpu.memory_space<vmem>>, vector<2x8x32xf32>,
    return
  }
  func.func @transform_0(%arg0: i32) -> (i32, i32, i32) {
    %c0_i32 = arith.constant 0 : i32
    %c0_i32_0 = arith.constant 0 : i32
    %c0_i32_1 = arith.constant 0 : i32
    return %arg0, %c0_i32, %c0_i32_0 : i32, i32, i32
  }
  func.func @transform_1(%arg0: i32) -> (i32, i32) {
    %c0_i32 = arith.constant 0 : i32
    %c0_i32_0 = arith.constant 0 : i32
    %c0_i32_1 = arith.constant 0 : i32
    return %c0_i32, %c0_i32_0 : i32, i32
  }
  func.func @transform_2(%arg0: i32) -> (i32, i32, i32) {
    %c0_i32 = arith.constant 0 : i32
    %c0_i32_0 = arith.constant 0 : i32
    %c0_i32_1 = arith.constant 0 : i32
    return %arg0, %c0_i32, %c0_i32_0 : i32, i32, i32
  }
}

</mosaic_0001>

<llo_original>
// kernel: tpu_custom_call.1
$region0: #{tpu_custom_call.1}
  #allocation0 [shape = 'u32[]', space=smem, size = 0x4, offset = 0x4, fixed_abs, tag = 'smem constant byte address 0x4 - core index']
  #allocation1 [shape = 'u32[144,128]{1,0:T(1,128)}', space=vmem, size = 0x12000, scoped, tag = 'internal scratch']
  %s0 = inlined_call_operand.hbm [shape: f32[2,8,128], index: 0, kind: input, shape index: {}]
  %s1 = inlined_call_operand.hbm [shape: f32[128,96], index: 1, kind: input, shape index: {}]
  %s2 = inlined_call_operand.hbm [shape: f32[2,8,32], index: 2, kind: output, shape index: {}]
  %s3 = sld [smem:[#allocation0]]
  $region26: #{tpu_custom_call.1} parent=0
    _
  %s5 = ssub.s32 1, %s3
  %s6 = scalar_select 0, %s5, %s3
  $region1: #{tpu_custom_call.1} parent=0
    #allocation2 [shape = 'u8[8192]{0}', space=vmem, size = 0x2000, scoped, tag = 'input window, operand 0, single buffered']
    #allocation3 [shape = 's32[1]{0}', space=sflag, size = 0x4, scoped, tag = 'scoped memory for tpu_custom_call.1']
    #allocation4 [shape = 's32[1]{0}', space=sflag, size = 0x4, scoped, tag = 'scoped memory for tpu_custom_call.1']
    #allocation5 [shape = 'u8[65536]{0}', space=vmem, size = 0x10000, scoped, tag = 'input window, operand 1, single buffered']
    #allocation6 [shape = 's32[1]{0}', space=sflag, size = 0x4, scoped, tag = 'scoped memory for tpu_custom_call.1']
    #allocation7 [shape = 'u8[8192]{0}', space=vmem, size = 0x2000, scoped, tag = 'output window, operand 0, single buffered']
    %7 = vsyncpa [#allocation3], 0
    %8 = vsyncpa [#allocation6], 0
    %9 = vsyncpa [#allocation4], 0
    // Predicated region
    $region2: #{tpu_custom_call.1} parent=1 // pred_check
      _
    $region3: #{tpu_custom_call.1} parent=1 // pred_check_branch
      %11 = sbr.rel (0) target = $region5
    $region4: #{tpu_custom_call.1} parent=1 // pred_region
      %s13 = ssub.s32 256, 256
      %14 = vsyncadd [#allocation3], %s13
      %s15 = sshll.u32 [#allocation2], 4
      %s16 = int_to_ptr.vmem [resolvable:$true] %s15
      %21 = dma.hbm_to_vmem [thread:$0]  %s0, 256, %s16, [#allocation3], 128, 128, 8
    $region5: #{tpu_custom_call.1} parent=1 // pred_fallthru
      _
    // Predicated region
    $region6: #{tpu_custom_call.1} parent=1 // pred_check
      _
    $region7: #{tpu_custom_call.1} parent=1 // pred_check_branch
      %23 = sbr.rel (0) target = $region9
    $region8: #{tpu_custom_call.1} parent=1 // pred_region
      %s25 = ssub.s32 2048, 2048
      %26 = vsyncadd [#allocation6], %s25
      %s27 = sshll.u32 [#allocation5], 4
      %s28 = int_to_ptr.vmem [resolvable:$true] %s27
      %33 = dma.hbm_to_vmem [thread:$0]  %s1, 2048, %s28, [#allocation6], 128, 128, 8
    $region9: #{tpu_custom_call.1} parent=1 // pred_fallthru
      _
    // Predicated region
    $region10: #{tpu_custom_call.1} parent=1 // pred_check
      _
    $region11: #{tpu_custom_call.1} parent=1 // pred_check_branch
      %35 = sbr.rel (0) target = $region13
    $region12: #{tpu_custom_call.1} parent=1 // pred_region
      %36 = dma.done [#allocation3], 256
    $region13: #{tpu_custom_call.1} parent=1 // pred_fallthru
      _
    // Predicated region
    $region14: #{tpu_custom_call.1} parent=1 // pred_check
      _
    $region15: #{tpu_custom_call.1} parent=1 // pred_check_branch
      %38 = sbr.rel (0) target = $region17
    $region16: #{tpu_custom_call.1} parent=1 // pred_region
      %39 = dma.done [#allocation6], 2048
    $region17: #{tpu_custom_call.1} parent=1 // pred_fallthru
      _
    %v41 = vld [vmem:[#allocation2] sm:$0xff]
    %v42 = vld [vmem:[#allocation2 + $0x8] sm:$0xff]
    %v43 = vpack.c.bf16 %v42, %v41
    %v44 = vld [vmem:[#allocation5] sm:$0xff]
    %v45 = vld [vmem:[#allocation5 + $0x8] sm:$0xff]
    %v46 = vld [vmem:[#allocation5 + $0x10] sm:$0xff]
    %v47 = vld [vmem:[#allocation5 + $0x18] sm:$0xff]
    %v48 = vld [vmem:[#allocation5 + $0x20] sm:$0xff]
    %v49 = vld [vmem:[#allocation5 + $0x28] sm:$0xff]
    %v50 = vld [vmem:[#allocation5 + $0x30] sm:$0xff]
    %v51 = vld [vmem:[#allocation5 + $0x38] sm:$0xff]
    %v52 = vld [vmem:[#allocation5 + $0x40] sm:$0xff]
    %v53 = vld [vmem:[#allocation5 + $0x48] sm:$0xff]
    %v54 = vld [vmem:[#allocation5 + $0x50] sm:$0xff]
    %v55 = vld [vmem:[#allocation5 + $0x58] sm:$0xff]
    %v56 = vld [vmem:[#allocation5 + $0x60] sm:$0xff]
    %v57 = vld [vmem:[#allocation5 + $0x68] sm:$0xff]
    %v58 = vld [vmem:[#allocation5 + $0x70] sm:$0xff]
    %v59 = vld [vmem:[#allocation5 + $0x78] sm:$0xff]
    %v60 = vpack.c.bf16 %v45, %v44
    %v61 = vpack.c.bf16 %v47, %v46
    %v62 = vpack.c.bf16 %v49, %v48
    %v63 = vpack.c.bf16 %v51, %v50
    %v64 = vpack.c.bf16 %v53, %v52
    %v65 = vpack.c.bf16 %v55, %v54
    %v66 = vpack.c.bf16 %v57, %v56
    %v67 = vpack.c.bf16 %v59, %v58
    %68 = vmatprep.subr.bf16.mxu0 0
    %69 = vmatpush1.bf16.msra.mxu0 %v60
    %70 = vmatprep.subr.bf16.mxu0 0
    %71 = vmatpush1.bf16.msra.mxu0 %v61
    %72 = vmatprep.subr.bf16.mxu0 0
    %73 = vmatpush1.bf16.msra.mxu0 %v62
    %74 = vmatprep.subr.bf16.mxu0 0
    %75 = vmatpush1.bf16.msra.mxu0 %v63
    %76 = vmatprep.subr.bf16.mxu0 0
    %77 = vmatpush1.bf16.msra.mxu0 %v64
    %78 = vmatprep.subr.bf16.mxu0 0
    %79 = vmatpush1.bf16.msra.mxu0 %v65
    %80 = vmatprep.subr.bf16.mxu0 0
    %81 = vmatpush1.bf16.msra.mxu0 %v66
    %82 = vmatprep.subr.bf16.mxu0 0
    %83 = vmatpush1.bf16.msra.mxu0 %v67
    %84 = vmatprep.subr.bf16.mxu0 0
    %85 = vmatpush1.bf16.msra.mxu0 0
    %86 = vmatprep.subr.bf16.mxu0 0
    %87 = vmatpush1.bf16.msra.mxu0 0
    %88 = vmatprep.subr.bf16.mxu0 0
    %89 = vmatpush1.bf16.msra.mxu0 0
    %90 = vmatprep.subr.bf16.mxu0 0
    %91 = vmatpush1.bf16.msra.mxu0 0
    %92 = vmatprep.subr.bf16.mxu0 0
    %93 = vmatpush1.bf16.msra.mxu0 0
    %94 = vmatprep.subr.bf16.mxu0 0
    %95 = vmatpush1.bf16.msra.mxu0 0
    %96 = vmatprep.subr.bf16.mxu0 0
    %97 = vmatpush1.bf16.msra.mxu0 0
    %98 = vmatprep.subr.bf16.mxu0 0
    %99 = vmatpush1.bf16.msra.mxu0 0
    %100 = vmatprep.mubr.bf16.mxu0 0
    %101 = vmatmul.mubr.bf16.gmra.mrb[0].mxu0 %v43
    %v102 = vpop.f32.mrb[0].mxu0
    %v103 = vadd.f32 0.0, %v102
    %v104 = vpop.f32.mrb[0].mxu0
    %v105 = vpop.f32.mrb[0].mxu0
    %v106 = vadd.f32 0.0, %v105
    %v107 = vpop.f32.mrb[0].mxu0
    %108 = vdwg.mxu0
    %v109 = vmul.f32 %v103, 0.17677669
    %v110 = vmul.f32 %v106, 0.17677669
    %v111 = vpack.c.bf16 %v109, %v109
    %v112 = vpack.c.bf16 %v110, %v110
    %v113 = vpack.c.bf16 %v103, %v103
    %v114 = vpack.c.bf16 %v106, %v106
    %116 = vrot.lane.b32.xlu0 %v113, 96
    %v117 = vpop.permute.xlu0 %116
    %vm118 = vcmask 261120
    %v120 = vsel %vm118, %v111, 0
    %v123 = vsel %vm118, %v117, 0
    %125 = vmatprep.subr.bf16.mxu0 0
    %126 = vmatpush1.bf16.xpose.msra.mxu0 %v123
    %127 = vmatprep.subr.bf16.mxu0 0
    %128 = vmatpush1.bf16.xpose.msra.mxu0 0
    %129 = vmatprep.subr.bf16.mxu0 0
    %130 = vmatpush1.bf16.xpose.msra.mxu0 0
    %131 = vmatprep.subr.bf16.mxu0 0
    %132 = vmatpush1.bf16.xpose.msra.mxu0 0
    %133 = vmatprep.subr.bf16.mxu0 0
    %134 = vmatpush1.bf16.xpose.msra.mxu0 0
    %135 = vmatprep.subr.bf16.mxu0 0
    %136 = vmatpush1.bf16.xpose.msra.mxu0 0
    %137 = vmatprep.subr.bf16.mxu0 0
    %138 = vmatpush1.bf16.xpose.msra.mxu0 0
    %139 = vmatprep.subr.bf16.mxu0 0
    %140 = vmatpush1.bf16.xpose.msra.mxu0 0
    %141 = vmatprep.subr.bf16.mxu0 0
    %142 = vmatpush1.bf16.xpose.msra.mxu0 0
    %143 = vmatprep.subr.bf16.mxu0 0
    %144 = vmatpush1.bf16.xpose.msra.mxu0 0
    %145 = vmatprep.subr.bf16.mxu0 0
    %146 = vmatpush1.bf16.xpose.msra.mxu0 0
    %147 = vmatprep.subr.bf16.mxu0 0
    %148 = vmatpush1.bf16.xpose.msra.mxu0 0
    %149 = vmatprep.subr.bf16.mxu0 0
    %150 = vmatpush1.bf16.xpose.msra.mxu0 0
    %151 = vmatprep.subr.bf16.mxu0 0
    %152 = vmatpush1.bf16.xpose.msra.mxu0 0
    %153 = vmatprep.subr.bf16.mxu0 0
    %154 = vmatpush1.bf16.xpose.msra.mxu0 0
    %155 = vmatprep.subr.bf16.mxu0 0
    %156 = vmatpush1.bf16.xpose.msra.mxu0 0
    %157 = vmatprep.mubr.bf16.mxu0 0
    %158 = vmatmul.mubr.bf16.gmra.mrb[0].mxu0 %v120
    %v159 = vpop.f32.mrb[0].mxu0
    %v160 = vadd.f32 0.0, %v159
    %v161 = vpop.f32.mrb[0].mxu0
    %v162 = vpop.f32.mrb[0].mxu0
    %v163 = vpop.f32.mrb[0].mxu0
    %164 = vdwg.mxu0
    %166 = vrot.lane.b32.xlu0 %v114, 96
    %v167 = vpop.permute.xlu0 %166
    %v169 = vsel %vm118, %v112, 0
    %v172 = vsel %vm118, %v167, 0
    %174 = vmatprep.subr.bf16.mxu0 0
    %175 = vmatpush1.bf16.xpose.msra.mxu0 %v172
    %176 = vmatprep.subr.bf16.mxu0 0
    %177 = vmatpush1.bf16.xpose.msra.mxu0 0
    %178 = vmatprep.subr.bf16.mxu0 0
    %179 = vmatpush1.bf16.xpose.msra.mxu0 0
    %180 = vmatprep.subr.bf16.mxu0 0
    %181 = vmatpush1.bf16.xpose.msra.mxu0 0
    %182 = vmatprep.subr.bf16.mxu0 0
    %183 = vmatpush1.bf16.xpose.msra.mxu0 0
    %184 = vmatprep.subr.bf16.mxu0 0
    %185 = vmatpush1.bf16.xpose.msra.mxu0 0
    %186 = vmatprep.subr.bf16.mxu0 0
    %187 = vmatpush1.bf16.xpose.msra.mxu0 0
    %188 = vmatprep.subr.bf16.mxu0 0
    %189 = vmatpush1.bf16.xpose.msra.mxu0 0
    %190 = vmatprep.subr.bf16.mxu0 0
    %191 = vmatpush1.bf16.xpose.msra.mxu0 0
    %192 = vmatprep.subr.bf16.mxu0 0
    %193 = vmatpush1.bf16.xpose.msra.mxu0 0
    %194 = vmatprep.subr.bf16.mxu0 0
    %195 = vmatpush1.bf16.xpose.msra.mxu0 0
    %196 = vmatprep.subr.bf16.mxu0 0
    %197 = vmatpush1.bf16.xpose.msra.mxu0 0
    %198 = vmatprep.subr.bf16.mxu0 0
    %199 = vmatpush1.bf16.xpose.msra.mxu0 0
    %200 = vmatprep.subr.bf16.mxu0 0
    %201 = vmatpush1.bf16.xpose.msra.mxu0 0
    %202 = vmatprep.subr.bf16.mxu0 0
    %203 = vmatpush1.bf16.xpose.msra.mxu0 0
    %204 = vmatprep.subr.bf16.mxu0 0
    %205 = vmatpush1.bf16.xpose.msra.mxu0 0
    %206 = vmatprep.mubr.bf16.mxu0 0
    %207 = vmatmul.mubr.bf16.gmra.mrb[0].mxu0 %v169
    %v208 = vpop.f32.mrb[0].mxu0
    %v209 = vadd.f32 0.0, %v208
    %v210 = vpop.f32.mrb[0].mxu0
    %v211 = vpop.f32.mrb[0].mxu0
    %v212 = vpop.f32.mrb[0].mxu0
    %213 = vdwg.mxu0
    %v214 = vlaneseq
    %v215 = vshrl.u32 %v214, 7
    %v216 = vlaneseq
    %v217 = vand.u32 %v216, 127
    %vm218 = vcmp.ge.s32.totalorder %v215, %v217
    %v219 = vsel %vm218, 1, 0
    %vm220 = vcmp.eq.s32.totalorder %v219, 1
    %v221 = vsel %vm220, %v160, -inf
    %v222 = vsel %vm220, %v209, -inf
    %vm223 = vcmask 64512
    %v224 = vsel %vm223, %v221, -inf
    %225 = vmax.xlane.f32.xlu0 %v224
    %v226 = vpop.xlane.xlu0 %225
    %v227 = vsel %vm223, %v222, -inf
    %228 = vmax.xlane.f32.xlu0 %v227
    %v229 = vpop.xlane.xlu0 %228
    %v230 = vsub.f32 %v221, %v226
    %v231 = vsub.f32 %v222, %v229
    %v232 = vmul.f32 %v230, 1.442695
    %v233 = vpow.pop %v232
    %v234 = vmul.f32 %v231, 1.442695
    %v235 = vpow.pop %v234
    %v236 = vsel %vm223, %v233, 0.0
    %237 = vadd.xlane.f32.xlu0 %v236
    %v238 = vpop.xlane.xlu0 %237
    %v239 = vsel %vm223, %v235, 0.0
    %240 = vadd.xlane.f32.xlu0 %v239
    %v241 = vpop.xlane.xlu0 %240
    %v242 = vrcp.pop %v238
    %v243 = vrcp.pop %v241
    %v244 = vpack.c.bf16 %v233, %v233
    %v245 = vpack.c.bf16 %v235, %v235
    %246 = vrot.lane.b32.xlu0 %v113, 64
    %v247 = vpop.permute.xlu0 %246
    %v249 = vsel %vm223, %v244, 0
    %vm251 = vcmask 1043456
    %v253 = vsel %vm251, %v247, 0
    %255 = vmatprep.subr.bf16.mxu0 0
    %256 = vmatpush1.bf16.msra.mxu0 %v253
    %257 = vmatprep.subr.bf16.mxu0 0
    %258 = vmatpush1.bf16.msra.mxu0 0
    %259 = vmatprep.subr.bf16.mxu0 0
    %260 = vmatpush1.bf16.msra.mxu0 0
    %261 = vmatprep.subr.bf16.mxu0 0
    %262 = vmatpush1.bf16.msra.mxu0 0
    %263 = vmatprep.subr.bf16.mxu0 0
    %264 = vmatpush1.bf16.msra.mxu0 0
    %265 = vmatprep.subr.bf16.mxu0 0
    %266 = vmatpush1.bf16.msra.mxu0 0
    %267 = vmatprep.subr.bf16.mxu0 0
    %268 = vmatpush1.bf16.msra.mxu0 0
    %269 = vmatprep.subr.bf16.mxu0 0
    %270 = vmatpush1.bf16.msra.mxu0 0
    %271 = vmatprep.subr.bf16.mxu0 0
    %272 = vmatpush1.bf16.msra.mxu0 0
    %273 = vmatprep.subr.bf16.mxu0 0
    %274 = vmatpush1.bf16.msra.mxu0 0
    %275 = vmatprep.subr.bf16.mxu0 0
    %276 = vmatpush1.bf16.msra.mxu0 0
    %277 = vmatprep.subr.bf16.mxu0 0
    %278 = vmatpush1.bf16.msra.mxu0 0
    %279 = vmatprep.subr.bf16.mxu0 0
    %280 = vmatpush1.bf16.msra.mxu0 0
    %281 = vmatprep.subr.bf16.mxu0 0
    %282 = vmatpush1.bf16.msra.mxu0 0
    %283 = vmatprep.subr.bf16.mxu0 0
    %284 = vmatpush1.bf16.msra.mxu0 0
    %285 = vmatprep.subr.bf16.mxu0 0
    %286 = vmatpush1.bf16.msra.mxu0 0
    %287 = vmatprep.mubr.bf16.mxu0 0
    %288 = vmatmul.mubr.bf16.gmra.mrb[0].mxu0 %v249
    %v289 = vpop.f32.mrb[0].mxu0
    %v290 = vadd.f32 0.0, %v289
    %v291 = vpop.f32.mrb[0].mxu0
    %v292 = vpop.f32.mrb[0].mxu0
    %v293 = vpop.f32.mrb[0].mxu0
    %294 = vdwg.mxu0
    %295 = vrot.lane.b32.xlu0 %v114, 64
    %v296 = vpop.permute.xlu0 %295
    %v298 = vsel %vm223, %v245, 0
    %v301 = vsel %vm251, %v296, 0
    %303 = vmatprep.subr.bf16.mxu0 0
    %304 = vmatpush1.bf16.msra.mxu0 %v301
    %305 = vmatprep.subr.bf16.mxu0 0
    %306 = vmatpush1.bf16.msra.mxu0 0
    %307 = vmatprep.subr.bf16.mxu0 0
    %308 = vmatpush1.bf16.msra.mxu0 0
    %309 = vmatprep.subr.bf16.mxu0 0
    %310 = vmatpush1.bf16.msra.mxu0 0
    %311 = vmatprep.subr.bf16.mxu0 0
    %312 = vmatpush1.bf16.msra.mxu0 0
    %313 = vmatprep.subr.bf16.mxu0 0
    %314 = vmatpush1.bf16.msra.mxu0 0
    %315 = vmatprep.subr.bf16.mxu0 0
    %316 = vmatpush1.bf16.msra.mxu0 0
    %317 = vmatprep.subr.bf16.mxu0 0
    %318 = vmatpush1.bf16.msra.mxu0 0
    %319 = vmatprep.subr.bf16.mxu0 0
    %320 = vmatpush1.bf16.msra.mxu0 0
    %321 = vmatprep.subr.bf16.mxu0 0
    %322 = vmatpush1.bf16.msra.mxu0 0
    %323 = vmatprep.subr.bf16.mxu0 0
    %324 = vmatpush1.bf16.msra.mxu0 0
    %325 = vmatprep.subr.bf16.mxu0 0
    %326 = vmatpush1.bf16.msra.mxu0 0
    %327 = vmatprep.subr.bf16.mxu0 0
    %328 = vmatpush1.bf16.msra.mxu0 0
    %329 = vmatprep.subr.bf16.mxu0 0
    %330 = vmatpush1.bf16.msra.mxu0 0
    %331 = vmatprep.subr.bf16.mxu0 0
    %332 = vmatpush1.bf16.msra.mxu0 0
    %333 = vmatprep.subr.bf16.mxu0 0
    %334 = vmatpush1.bf16.msra.mxu0 0
    %335 = vmatprep.mubr.bf16.mxu0 0
    %336 = vmatmul.mubr.bf16.gmra.mrb[0].mxu0 %v298
    %v337 = vpop.f32.mrb[0].mxu0
    %v338 = vadd.f32 0.0, %v337
    %v339 = vpop.f32.mrb[0].mxu0
    %v340 = vpop.f32.mrb[0].mxu0
    %v341 = vpop.f32.mrb[0].mxu0
    %342 = vdwg.mxu0
    %v343 = vmul.f32 %v290, %v242
    %v344 = vmul.f32 %v338, %v243
    %345 = vst.msk [vmem:[#allocation7] sm:$0xff] %vm118, %v343
    %346 = vst.msk [vmem:[#allocation7 + $0x8] sm:$0xff] %vm118, %v344
    // Predicated region
    $region18: #{tpu_custom_call.1} parent=1 // pred_check
      _
    $region19: #{tpu_custom_call.1} parent=1 // pred_check_branch
      %348 = sbr.rel (0) target = $region21
    $region20: #{tpu_custom_call.1} parent=1 // pred_region
      %s350 = ssub.s32 256, 256
      %351 = vsyncadd [#allocation4], %s350
      %s352 = sshll.u32 [#allocation7], 4
      %s353 = int_to_ptr.vmem [resolvable:$true] %s352
      %358 = dma.vmem_to_hbm [thread:$0]  %s353, 256, %s2, [#allocation4], 128, 128, 8
    $region21: #{tpu_custom_call.1} parent=1 // pred_fallthru
      _
    // Predicated region
    $region22: #{tpu_custom_call.1} parent=1 // pred_check
      _
    $region23: #{tpu_custom_call.1} parent=1 // pred_check_branch
      %360 = sbr.rel (0) target = $region25
    $region24: #{tpu_custom_call.1} parent=1 // pred_region
      %361 = dma.done [#allocation4], 256
    $region25: #{tpu_custom_call.1} parent=1 // pred_fallthru
      _
    %362 = vsyncpa [#allocation3], 1
    %363 = vsyncpa [#allocation6], 1
    %364 = vsyncpa [#allocation4], 1

</llo_original>
